<compile_context>
chip_gen: v5e
topology: v5e:2x2
jax: 0.10.0
libtpu: 0.0.40
codegen_flags: <defaults>
</compile_context>

<pallas_src>
import jax
import jax.numpy as jnp
from jax.experimental import pallas as pl
from jax.experimental.pallas import tpu as pltpu

# ------------------------- model dimensions -------------------------
OBS = 16          # observation vector size
IN_FEAT = 32      # in_block output size
HID = 32          # hidden_block hidden layer size
ACT_N = 4         # action_space.n
N_ACTOR = 8       # actor_num
SIDE = 1 + 1 + ACT_N + N_ACTOR      # 14 raw UVFA side features
SIDE_PAD = 16                       # zero-padded side width
IN_ROWS = OBS + SIDE_PAD            # 32 kernel-input feature rows
OUT_ROWS = 8                        # ACT_N padded to a full sublane group

# packed parameter slab layout (feature-major / transposed weights, rows 8-aligned)
P_COLS = 32
R_WIN = 0       # w_in.T     rows [  0, 32), cols [0, OBS)
R_W1H = 32      # w1_h.T     rows [ 32, 64), cols [0, IN_FEAT)
R_W1S = 64      # w1_side.T  rows [ 64, 96), cols [0, SIDE)   (cols SIDE..15 zero)
R_W2 = 96       # w2.T       rows [ 96,104), cols [0, HID)    (rows ACT_N..7 zero)
R_BIAS = 104    # rows [104,136): col 0 = b_in, col 1 = b1, col 2[0:ACT_N] = b2
P_ROWS = 136

BT = 4096               # batch tile (lane axis) for the gridded hot path
SINGLE_SHOT_MAX = 8192  # <= this many rows: single-shot, no grid


# ------------------------------ kernel ------------------------------
def qnetwork_kernel(x_ref, p_ref, out_ref):
    cd = p_ref.dtype
    s = x_ref[0:OBS, :]                        # (OBS, bt)       state features
    side = x_ref[OBS:IN_ROWS, :]               # (SIDE_PAD, bt)  rewards/one-hots (+0 pad)

    # in_block: ReLU(W_in^T @ s + b_in)
    h = jnp.dot(p_ref[R_WIN:R_WIN + IN_FEAT, 0:OBS], s,
                preferred_element_type=jnp.float32)
    h = jnp.maximum(h + p_ref[R_BIAS:R_BIAS + IN_FEAT, 0:1], 0.0)

    # hidden layer 1 on the UVFA concat:
    #   W1^T @ concat([h; side]) == W1h^T @ h + W1s^T @ side   (exact split)
    z = jnp.dot(p_ref[R_W1H:R_W1H + HID, 0:IN_FEAT], h.astype(cd),
                preferred_element_type=jnp.float32)
    z = z + jnp.dot(p_ref[R_W1S:R_W1S + HID, 0:SIDE_PAD], side,
                    preferred_element_type=jnp.float32)
    h1 = jnp.maximum(z + p_ref[R_BIAS:R_BIAS + HID, 1:2], 0.0)

    # output layer: Linear(HID -> ACT_N); rows [ACT_N, OUT_ROWS) are exactly 0.
    out_ref[...] = (
        jnp.dot(p_ref[R_W2:R_W2 + OUT_ROWS, 0:HID], h1.astype(cd),
                preferred_element_type=jnp.float32)
        + p_ref[R_BIAS:R_BIAS + OUT_ROWS, 2:3]
    )


# ----------------------------- wrappers ------------------------------
def pack_params(p, dtype=jnp.float32):
    """Pack all parameters (transposed, feature-major) into one (136, 32) slab."""
    slab = jnp.zeros((P_ROWS, P_COLS), jnp.float32)
    slab = slab.at[R_WIN:R_WIN + IN_FEAT, :OBS].set(p["w_in"].T)
    slab = slab.at[R_W1H:R_W1H + HID, :IN_FEAT].set(p["w1_h"].T)
    w1_side = jnp.concatenate(
        [p["w1_re"], p["w1_ri"], p["w1_a"], p["w1_actor"]], axis=0)   # (SIDE, HID)
    slab = slab.at[R_W1S:R_W1S + HID, :SIDE].set(w1_side.T)
    slab = slab.at[R_W2:R_W2 + ACT_N, :HID].set(p["w2"].T)
    slab = slab.at[R_BIAS:R_BIAS + IN_FEAT, 0].set(p["b_in"][0])
    slab = slab.at[R_BIAS:R_BIAS + HID, 1].set(p["b1"][0])
    slab = slab.at[R_BIAS:R_BIAS + ACT_N, 2].set(p["b2"][0])
    return slab.astype(dtype)


def qnetwork_forward(state, reward_ext, reward_int, onehot_action, onehot_actor,
                     param_slab, *, block_batch=BT, single_shot_max=SINGLE_SHOT_MAX):
    b = state.shape[0]
    cd = param_slab.dtype

    # Single feature-major input: rows [0:16)=state, [16:30)=side, [30:32)=0.
    pad = jnp.zeros((b, SIDE_PAD - SIDE), cd)
    x_t = jnp.concatenate(
        [state.astype(cd), reward_ext.astype(cd), reward_int.astype(cd),
         onehot_action.astype(cd), onehot_actor.astype(cd), pad], axis=1).T  # (32, b)

    if b <= single_shot_max:
        # Small/medium batch: single-shot, whole arrays VMEM-resident, no grid.
        out = pl.pallas_call(
            qnetwork_kernel,
            out_shape=jax.ShapeDtypeStruct((OUT_ROWS, b), jnp.float32),
            in_specs=[
                pl.BlockSpec(memory_space=pltpu.MemorySpace.VMEM),
                pl.BlockSpec(memory_space=pltpu.MemorySpace.VMEM),
            ],
            out_specs=pl.BlockSpec(memory_space=pltpu.MemorySpace.VMEM),
        )(x_t, param_slab)
        return out[:ACT_N].T

    # Hot path: grid over batch (on lanes), weights VMEM-resident, >= 3 steps
    # so the "parallel" axis can shard across v7x's two TensorCores.
    flops = 2 * b * (OBS * IN_FEAT + IN_FEAT * HID + SIDE_PAD * HID + HID * OUT_ROWS)
    bytes_accessed = (x_t.size * x_t.dtype.itemsize
                      + param_slab.size * param_slab.dtype.itemsize
                      + OUT_ROWS * b * 4)
    out = pl.pallas_call(
        qnetwork_kernel,
        out_shape=jax.ShapeDtypeStruct((OUT_ROWS, b), jnp.float32),
        grid=(pl.cdiv(b, block_batch),),
        in_specs=[
            pl.BlockSpec((IN_ROWS, block_batch), lambda i: (0, i)),
            pl.BlockSpec((P_ROWS, P_COLS), lambda i: (0, 0)),   # resident weights
        ],
        out_specs=pl.BlockSpec((OUT_ROWS, block_batch), lambda i: (0, i)),
        compiler_params=pltpu.CompilerParams(
            dimension_semantics=("parallel",)),
        cost_estimate=pl.CostEstimate(
            flops=flops, transcendentals=0, bytes_accessed=bytes_accessed),
    )(x_t, param_slab)
    return out[:ACT_N].T


# --------------------------- init & reference ---------------------------
def init_params(key):
    ks = jax.random.split(key, 8)
    fan = IN_FEAT + 2 + ACT_N + N_ACTOR

    def w(k, shape, fan_in):
        return (jax.random.normal(k, shape, jnp.float32) / jnp.sqrt(fan_in)
                ).astype(jnp.float32)

    return {
        "w_in": w(ks[0], (OBS, IN_FEAT), OBS),
        "b_in": jnp.zeros((1, IN_FEAT), jnp.float32),
        "w1_h": w(ks[1], (IN_FEAT, HID), fan),
        "w1_re": w(ks[2], (1, HID), fan),
        "w1_ri": w(ks[3], (1, HID), fan),
        "w1_a": w(ks[4], (ACT_N, HID), fan),
        "w1_actor": w(ks[5], (N_ACTOR, HID), fan),
        "b1": jnp.zeros((1, HID), jnp.float32),
        "w2": w(ks[6], (HID, ACT_N), HID),
        "b2": jnp.zeros((1, ACT_N), jnp.float32),
    }


def reference_forward(state, r_ext, r_int, oh_act, oh_actor, p):
    h = jnp.maximum(state @ p["w_in"] + p["b_in"], 0.0)
    x = jnp.concatenate([h, r_ext, r_int, oh_act, oh_actor], axis=1)
    w1 = jnp.concatenate(
        [p["w1_h"], p["w1_re"], p["w1_ri"], p["w1_a"], p["w1_actor"]], axis=0)
    h1 = jnp.maximum(x @ w1 + p["b1"], 0.0)
    return h1 @ p["w2"] + p["b2"]


def make_inputs(key, batch):
    k_state, k_re, k_ri, k_a, k_ac = jax.random.split(key, 5)
    state = jax.random.normal(k_state, (batch, OBS), jnp.float32)
    reward_ext = jax.random.normal(k_re, (batch, 1), jnp.float32)
    reward_int = jax.random.normal(k_ri, (batch, 1), jnp.float32)
    act_idx = jax.random.randint(k_a, (batch,), 0, ACT_N)
    onehot_action = jax.nn.one_hot(act_idx, ACT_N, dtype=jnp.float32)
    actor_idx = jax.random.randint(k_ac, (batch,), 0, N_ACTOR)
    onehot_actor = jax.nn.one_hot(actor_idx, N_ACTOR, dtype=jnp.float32)
    return state, reward_ext, reward_int, onehot_action, onehot_actor


if __name__ == "__main__":
    key = jax.random.PRNGKey(0)
    k_a, k_b, k_c, k_param = jax.random.split(key, 4)

    params = init_params(k_param)
    slab_f32 = pack_params(params)

    # ---- small batch: single-shot (no-grid) path ----
    small = make_inputs(k_a, 8)
    q = jax.block_until_ready(qnetwork_forward(*small, slab_f32))
    q_ref = reference_forward(*small, params)
    assert q.shape == (8, ACT_N)
    assert jnp.allclose(q, q_ref, atol=1e-4, rtol=1e-4)

    # ---- gridded path, block-divisible batch (small tiles forced for the test) ----
    mid = make_inputs(k_b, 256)
    q_m = jax.block_until_ready(
        qnetwork_forward(*mid, slab_f32, block_batch=128, single_shot_max=0))
    q_m_ref = reference_forward(*mid, params)
    assert q_m.shape == (256, ACT_N)
    assert jnp.allclose(q_m, q_m_ref, atol=1e-4, rtol=1e-4)

    # ---- gridded path with a partial final block (no wrapper-side padding) ----
    odd = make_inputs(k_c, 200)
    q_o = jax.block_until_ready(
        qnetwork_forward(*odd, slab_f32, block_batch=128, single_shot_max=0))
    q_o_ref = reference_forward(*odd, params)
    assert q_o.shape == (200, ACT_N)
    assert jnp.allclose(q_o, q_o_ref, atol=1e-4, rtol=1e-4)

    # ---- optional bf16-operand mode (v6e/v7x), f32 accumulation / bias / ReLU ----
    slab_bf16 = pack_params(params, dtype=jnp.bfloat16)
    q_h = jax.block_until_ready(qnetwork_forward(*small, slab_bf16))
    assert q_h.shape == (8, ACT_N)
    assert jnp.allclose(q_h, q_ref, atol=5e-2, rtol=5e-2)

    print("KERNEL_OK")
</pallas_src>

<mosaic_0001>
module attributes {stable_mosaic.version = 11 : i64} {
  func.func @qnetwork_kernel(%arg0: memref<32x8xf32, #tpu.memory_space<vmem>>, %arg1: memref<136x32xf32, #tpu.memory_space<vmem>>, %arg2: memref<8x8xf32, #tpu.memory_space<vmem>>) attributes {dimension_semantics = [], scalar_prefetch = 0 : i64, scratch_operands = 0 : i64, tpu.core_type = #tpu.core_type<tc>} {
    %c0 = arith.constant 0 : index
    %c0_0 = arith.constant 0 : index
    %0 = vector.load %arg0[%c0, %c0_0] : memref<32x8xf32, #tpu.memory_space<vmem>>, vector<16x8xf32>
    %c16 = arith.constant 16 : index
    %c0_1 = arith.constant 0 : index
    %1 = vector.load %arg0[%c16, %c0_1] : memref<32x8xf32, #tpu.memory_space<vmem>>, vector<16x8xf32>
    %c0_2 = arith.constant 0 : index
    %c0_3 = arith.constant 0 : index
    %2 = vector.load %arg1[%c0_2, %c0_3] : memref<136x32xf32, #tpu.memory_space<vmem>>, vector<32x16xf32>
    %cst = arith.constant dense<0.000000e+00> : vector<32x8xf32>
    %3 = tpu.matmul %2, %0, %cst {dimension_numbers = #tpu.dot_dimension_numbers<[1], [0], [0], [1], [0, 0, 1, 1], [], []>} : vector<32x16xf32>, vector<16x8xf32>, vector<32x8xf32> -> vector<32x8xf32>
    %c104 = arith.constant 104 : index
    %c0_4 = arith.constant 0 : index
    %4 = vector.load %arg1[%c104, %c0_4] : memref<136x32xf32, #tpu.memory_space<vmem>>, vector<32x1xf32>
    %5 = vector.broadcast %4 : vector<32x1xf32> to vector<32x8xf32>
    %6 = arith.addf %3, %5 : vector<32x8xf32>
    %cst_5 = arith.constant 0.000000e+00 : f32
    %7 = vector.broadcast %cst_5 : f32 to vector<32x8xf32>
    %8 = arith.maximumf %6, %7 : vector<32x8xf32>
    %c32 = arith.constant 32 : index
    %c0_6 = arith.constant 0 : index
    %9 = vector.load %arg1[%c32, %c0_6] : memref<136x32xf32, #tpu.memory_space<vmem>>, vector<32x32xf32>
    %cst_7 = arith.constant dense<0.000000e+00> : vector<32x8xf32>
    %10 = tpu.matmul %9, %8, %cst_7 {dimension_numbers = #tpu.dot_dimension_numbers<[1], [0], [0], [1], [0, 0, 1, 1], [], []>} : vector<32x32xf32>, vector<32x8xf32>, vector<32x8xf32> -> vector<32x8xf32>
    %c64 = arith.constant 64 : index
    %c0_8 = arith.constant 0 : index
    %11 = vector.load %arg1[%c64, %c0_8] : memref<136x32xf32, #tpu.memory_space<vmem>>, vector<32x16xf32>
    %cst_9 = arith.constant dense<0.000000e+00> : vector<32x8xf32>
    %12 = tpu.matmul %11, %1, %cst_9 {dimension_numbers = #tpu.dot_dimension_numbers<[1], [0], [0], [1], [0, 0, 1, 1], [], []>} : vector<32x16xf32>, vector<16x8xf32>, vector<32x8xf32> -> vector<32x8xf32>
    %13 = arith.addf %10, %12 : vector<32x8xf32>
    %c104_10 = arith.constant 104 : index
    %c1 = arith.constant 1 : index
    %14 = vector.load %arg1[%c104_10, %c1] : memref<136x32xf32, #tpu.memory_space<vmem>>, vector<32x1xf32>
    %15 = vector.broadcast %14 : vector<32x1xf32> to vector<32x8xf32>
    %16 = arith.addf %13, %15 : vector<32x8xf32>
    %cst_11 = arith.constant 0.000000e+00 : f32
    %17 = vector.broadcast %cst_11 : f32 to vector<32x8xf32>
    %18 = arith.maximumf %16, %17 : vector<32x8xf32>
    %c96 = arith.constant 96 : index
    %c0_12 = arith.constant 0 : index
    %19 = vector.load %arg1[%c96, %c0_12] : memref<136x32xf32, #tpu.memory_space<vmem>>, vector<8x32xf32>
    %cst_13 = arith.constant dense<0.000000e+00> : vector<8x8xf32>
    %20 = tpu.matmul %19, %18, %cst_13 {dimension_numbers = #tpu.dot_dimension_numbers<[1], [0], [0], [1], [0, 0, 1, 1], [], []>} : vector<8x32xf32>, vector<32x8xf32>, vector<8x8xf32> -> vector<8x8xf32>
    %c104_14 = arith.constant 104 : index
    %c2 = arith.constant 2 : index
    %21 = vector.load %arg1[%c104_14, %c2] : memref<136x32xf32, #tpu.memory_space<vmem>>, vector<8x1xf32>
    %22 = vector.broadcast %21 : vector<8x1xf32> to vector<8x8xf32>
    %23 = arith.addf %20, %22 : vector<8x8xf32>
    %c0_15 = arith.constant 0 : index
    %c0_16 = arith.constant 0 : index
    %24 = vector.load %arg2[%c0_15, %c0_16] : memref<8x8xf32, #tpu.memory_space<vmem>>, vector<8x8xf32>
    tpu.vector_store %arg2[%c0_15, %c0_16], %23 {strides = array<i32>} : memref<8x8xf32, #tpu.memory_space<vmem>>, vector<8x8xf32>,
    return
  }
}

</mosaic_0001>

<llo_original>
// kernel: tpu_custom_call.1
$region0: #{tpu_custom_call.1}
  #allocation0 [shape = 'u32[]', space=smem, size = 0x4, offset = 0x4, fixed_abs, tag = 'smem constant byte address 0x4 - core index']
  #allocation1 [shape = 'u32[72,128]{1,0:T(1,128)}', space=vmem, size = 0x9000, scoped, tag = 'internal scratch']
  %s0 = inlined_call_operand.vmem [shape: f32[32,8], index: 0, kind: input, shape index: {}]
  %s1 = inlined_call_operand.vmem [shape: f32[136,32], index: 1, kind: input, shape index: {}]
  %s2 = inlined_call_operand.hbm [shape: f32[8,8], index: 2, kind: output, shape index: {}]
  %s3 = sld [smem:[#allocation0]]
  $region18: #{tpu_custom_call.1} parent=0
    _
  %s5 = ssub.s32 1, %s3
  %s6 = scalar_select 0, %s5, %s3
  $region1: #{tpu_custom_call.1} parent=0
    #allocation2 [shape = 'u8[4096]{0}', space=vmem, size = 0x1000, scoped, tag = 'output window, operand 0, single buffered']
    #allocation3 [shape = 's32[1]{0}', space=sflag, size = 0x4, scoped, tag = 'scoped memory for tpu_custom_call.1']
    %7 = vsyncpa [#allocation3], 0
    // Predicated region
    $region2: #{tpu_custom_call.1} parent=1 // pred_check
      _
    $region3: #{tpu_custom_call.1} parent=1 // pred_check_branch
      %9 = sbr.rel (0) target = $region5
    $region4: #{tpu_custom_call.1} parent=1 // pred_region
      _
    $region5: #{tpu_custom_call.1} parent=1 // pred_fallthru
      _
    // Predicated region
    $region6: #{tpu_custom_call.1} parent=1 // pred_check
      _
    $region7: #{tpu_custom_call.1} parent=1 // pred_check_branch
      %11 = sbr.rel (0) target = $region9
    $region8: #{tpu_custom_call.1} parent=1 // pred_region
      _
    $region9: #{tpu_custom_call.1} parent=1 // pred_fallthru
      _
    %v12 = vld [vmem:[%s0] sm:$0xff]
    %v13 = vld [vmem:[%s0 + $0x8] sm:$0xff]
    %v14 = vld [vmem:[%s0 + $0x10] sm:$0xff]
    %v15 = vld [vmem:[%s0 + $0x18] sm:$0xff]
    %v16 = vld [vmem:[%s1] sm:$0xff]
    %v17 = vld [vmem:[%s1 + $0x8] sm:$0xff]
    %v18 = vld [vmem:[%s1 + $0x10] sm:$0xff]
    %v19 = vld [vmem:[%s1 + $0x18] sm:$0xff]
    %v20 = vld [vmem:[%s1 + $0x68] sm:$0xff]
    %v21 = vld [vmem:[%s1 + $0x70] sm:$0xff]
    %v22 = vld [vmem:[%s1 + $0x78] sm:$0xff]
    %v23 = vld [vmem:[%s1 + $0x80] sm:$0xff]
    %25 = vset.pattern.permute.xlu0 0
    %26 = vperm.xlu0 %25, %v20
    %v27 = vpop.permute.xlu0 %26
    %30 = vset.pattern.permute.xlu0 0
    %31 = vperm.xlu0 %30, %v21
    %v32 = vpop.permute.xlu0 %31
    %35 = vset.pattern.permute.xlu0 0
    %36 = vperm.xlu0 %35, %v22
    %v37 = vpop.permute.xlu0 %36
    %40 = vset.pattern.permute.xlu0 0
    %41 = vperm.xlu0 %40, %v23
    %v42 = vpop.permute.xlu0 %41
    %vm44 = vcmask 130048
    %v46 = vsel %vm44, %v16, 0
    %v49 = vsel %vm44, %v17, 0
    %v52 = vsel %vm44, %v18, 0
    %v55 = vsel %vm44, %v19, 0
    %57 = vmatpush.msra.mxu0 0.0
    %58 = vmatpush.msra.mxu0 0.0
    %59 = vmatpush.msra.mxu0 0.0
    %60 = vmatpush.msra.mxu0 0.0
    %61 = vmatpush.msra.mxu0 0.0
    %62 = vmatpush.msra.mxu0 0.0
    %63 = vmatpush.msra.mxu0 0.0
    %64 = vmatpush.msra.mxu0 0.0
    %65 = vmatpush.msra.mxu0 0.0
    %66 = vmatpush.msra.mxu0 0.0
    %67 = vmatpush.msra.mxu0 0.0
    %68 = vmatpush.msra.mxu0 0.0
    %69 = vmatpush.msra.mxu0 0.0
    %70 = vmatpush.msra.mxu0 0.0
    %71 = vmatpush.msra.mxu0 %v13
    %72 = vmatpush.msra.mxu0 %v12
    %73 = vmatmul.f32.gmra.mxu0 %v46
    %v74 = vpop.f32.mrf.mxu0
    %v75 = vadd.f32 %v27, %v74
    %76 = vmatmul.f32.gmra.mxu0 %v49
    %v77 = vpop.f32.mrf.mxu0
    %v78 = vadd.f32 %v32, %v77
    %79 = vmatmul.f32.gmra.mxu0 %v52
    %v80 = vpop.f32.mrf.mxu0
    %v81 = vadd.f32 %v37, %v80
    %82 = vmatmul.f32.gmra.mxu0 %v55
    %v83 = vpop.f32.mrf.mxu0
    %v84 = vadd.f32 %v42, %v83
    %85 = vdwg.mxu0
    %v86 = vmax.f32 %v75, 0.0
    %v87 = vmax.f32 %v78, 0.0
    %v88 = vmax.f32 %v81, 0.0
    %v89 = vmax.f32 %v84, 0.0
    %v90 = vld [vmem:[%s1 + $0x20] sm:$0xff]
    %v91 = vld [vmem:[%s1 + $0x28] sm:$0xff]
    %v92 = vld [vmem:[%s1 + $0x30] sm:$0xff]
    %v93 = vld [vmem:[%s1 + $0x38] sm:$0xff]
    %v94 = vld [vmem:[%s1 + $0x40] sm:$0xff]
    %v95 = vld [vmem:[%s1 + $0x48] sm:$0xff]
    %v96 = vld [vmem:[%s1 + $0x50] sm:$0xff]
    %v97 = vld [vmem:[%s1 + $0x58] sm:$0xff]
    %v99 = vsel %vm44, %v94, 0
    %v102 = vsel %vm44, %v95, 0
    %v105 = vsel %vm44, %v96, 0
    %v108 = vsel %vm44, %v97, 0
    %110 = vmatpush.msra.mxu0 0.0
    %111 = vmatpush.msra.mxu0 0.0
    %112 = vmatpush.msra.mxu0 0.0
    %113 = vmatpush.msra.mxu0 0.0
    %114 = vmatpush.msra.mxu0 0.0
    %115 = vmatpush.msra.mxu0 0.0
    %116 = vmatpush.msra.mxu0 0.0
    %117 = vmatpush.msra.mxu0 0.0
    %118 = vmatpush.msra.mxu0 0.0
    %119 = vmatpush.msra.mxu0 0.0
    %120 = vmatpush.msra.mxu0 0.0
    %121 = vmatpush.msra.mxu0 0.0
    %122 = vmatpush.msra.mxu0 0.0
    %123 = vmatpush.msra.mxu0 0.0
    %124 = vmatpush.msra.mxu0 %v15
    %125 = vmatpush.msra.mxu0 %v14
    %126 = vmatmul.f32.gmra.mxu0 %v99
    %v127 = vpop.f32.mrf.mxu0
    %v128 = vadd.f32 0.0, %v127
    %129 = vmatmul.f32.gmra.mxu0 %v102
    %v130 = vpop.f32.mrf.mxu0
    %v131 = vadd.f32 0.0, %v130
    %132 = vmatmul.f32.gmra.mxu0 %v105
    %v133 = vpop.f32.mrf.mxu0
    %v134 = vadd.f32 0.0, %v133
    %135 = vmatmul.f32.gmra.mxu0 %v108
    %v136 = vpop.f32.mrf.mxu0
    %v137 = vadd.f32 0.0, %v136
    %138 = vdwg.mxu0
    %vm139 = vcmask 261120
    %v141 = vsel %vm139, %v90, 0
    %v144 = vsel %vm139, %v91, 0
    %v147 = vsel %vm139, %v92, 0
    %v150 = vsel %vm139, %v93, 0
    %152 = vmatpush.msra.mxu0 0.0
    %153 = vmatpush.msra.mxu0 0.0
    %154 = vmatpush.msra.mxu0 0.0
    %155 = vmatpush.msra.mxu0 0.0
    %156 = vmatpush.msra.mxu0 0.0
    %157 = vmatpush.msra.mxu0 0.0
    %158 = vmatpush.msra.mxu0 0.0
    %159 = vmatpush.msra.mxu0 0.0
    %160 = vmatpush.msra.mxu0 0.0
    %161 = vmatpush.msra.mxu0 0.0
    %162 = vmatpush.msra.mxu0 0.0
    %163 = vmatpush.msra.mxu0 0.0
    %164 = vmatpush.msra.mxu0 %v89
    %165 = vmatpush.msra.mxu0 %v88
    %166 = vmatpush.msra.mxu0 %v87
    %167 = vmatpush.msra.mxu0 %v86
    %168 = vmatmul.f32.gmra.mxu0 %v141
    %v169 = vpop.f32.mrf.mxu0
    %v170 = vadd.f32 %v128, %v169
    %171 = vmatmul.f32.gmra.mxu0 %v144
    %v172 = vpop.f32.mrf.mxu0
    %v173 = vadd.f32 %v131, %v172
    %174 = vmatmul.f32.gmra.mxu0 %v147
    %v175 = vpop.f32.mrf.mxu0
    %v176 = vadd.f32 %v134, %v175
    %177 = vmatmul.f32.gmra.mxu0 %v150
    %v178 = vpop.f32.mrf.mxu0
    %v179 = vadd.f32 %v137, %v178
    %180 = vdwg.mxu0
    %181 = vset.pattern.permute.xlu0 1
    %182 = vperm.xlu0 %181, %v20
    %v183 = vpop.permute.xlu0 %182
    %185 = vset.pattern.permute.xlu0 1
    %186 = vperm.xlu0 %185, %v21
    %v187 = vpop.permute.xlu0 %186
    %189 = vset.pattern.permute.xlu0 1
    %190 = vperm.xlu0 %189, %v22
    %v191 = vpop.permute.xlu0 %190
    %193 = vset.pattern.permute.xlu0 1
    %194 = vperm.xlu0 %193, %v23
    %v195 = vpop.permute.xlu0 %194
    %v197 = vadd.f32 %v170, %v183
    %v198 = vadd.f32 %v173, %v187
    %v199 = vadd.f32 %v176, %v191
    %v200 = vadd.f32 %v179, %v195
    %v201 = vmax.f32 %v197, 0.0
    %v202 = vmax.f32 %v198, 0.0
    %v203 = vmax.f32 %v199, 0.0
    %v204 = vmax.f32 %v200, 0.0
    %v205 = vld [vmem:[%s1 + $0x60] sm:$0xff]
    %v206 = vld [vmem:[%s1 + $0x68] sm:$0xff]
    %208 = vset.pattern.permute.xlu0 2
    %209 = vperm.xlu0 %208, %v206
    %v210 = vpop.permute.xlu0 %209
    %v213 = vsel %vm139, %v205, 0
    %215 = vmatpush.msra.mxu0 0.0
    %216 = vmatpush.msra.mxu0 0.0
    %217 = vmatpush.msra.mxu0 0.0
    %218 = vmatpush.msra.mxu0 0.0
    %219 = vmatpush.msra.mxu0 0.0
    %220 = vmatpush.msra.mxu0 0.0
    %221 = vmatpush.msra.mxu0 0.0
    %222 = vmatpush.msra.mxu0 0.0
    %223 = vmatpush.msra.mxu0 0.0
    %224 = vmatpush.msra.mxu0 0.0
    %225 = vmatpush.msra.mxu0 0.0
    %226 = vmatpush.msra.mxu0 0.0
    %227 = vmatpush.msra.mxu0 %v204
    %228 = vmatpush.msra.mxu0 %v203
    %229 = vmatpush.msra.mxu0 %v202
    %230 = vmatpush.msra.mxu0 %v201
    %231 = vmatmul.f32.gmra.mxu0 %v213
    %v232 = vpop.f32.mrf.mxu0
    %v233 = vadd.f32 %v210, %v232
    %234 = vdwg.mxu0
    %vm235 = vcmask 64512
    %236 = vst.msk [vmem:[#allocation2] sm:$0xff] %vm235, %v233
    // Predicated region
    $region10: #{tpu_custom_call.1} parent=1 // pred_check
      _
    $region11: #{tpu_custom_call.1} parent=1 // pred_check_branch
      %238 = sbr.rel (0) target = $region13
    $region12: #{tpu_custom_call.1} parent=1 // pred_region
      %240 = vsyncadd [#allocation3], 0
      %s242 = sshll.u32 [#allocation2], 4
      %s243 = int_to_ptr.vmem [resolvable:$true] %s242
      %s244 = sshll.u32 %s2, 4
      %s245 = int_to_ptr.hbm [resolvable:$true] %s244
      %247 = dma.vmem_to_hbm [thread:$0]  %s243, 128, %s245, [#allocation3]
    $region13: #{tpu_custom_call.1} parent=1 // pred_fallthru
      _
    // Predicated region
    $region14: #{tpu_custom_call.1} parent=1 // pred_check
      _
    $region15: #{tpu_custom_call.1} parent=1 // pred_check_branch
      %249 = sbr.rel (0) target = $region17
    $region16: #{tpu_custom_call.1} parent=1 // pred_region
      %251 = dma.done [#allocation3], 128
    $region17: #{tpu_custom_call.1} parent=1 // pred_fallthru
      _
    %252 = vsyncpa [#allocation3], 1

</llo_original>
